<compile_context>
chip_gen: v7x
topology: tpu7x:2x2x1
jax: 0.10.0
libtpu: 0.0.40
codegen_flags: <defaults>
</compile_context>

<pallas_src>
from functools import partial

import jax
import jax.numpy as jnp
from jax.experimental import pallas as pl
from jax.experimental.pallas import tpu as pltpu


def _round_up(v, m):
    return (v + m - 1) // m * m


def _default_bf16_epilogue():
    # bf16 VPU epilogue helps on v6e/v7x; v2-v5 lack native bf16 VPU ops.
    try:
        kind = jax.devices()[0].device_kind.lower()
    except Exception:
        return True
    return not any(tag in kind for tag in ("v2", "v3", "v4", "v5"))


def _pick_tile(max_count, c_cat, hid_pad, c_pad, max_tile_n):
    """Largest point tile that fits a conservative VMEM budget (v7x-safe)."""
    budget = 40 * 1024 * 1024

    def footprint(tn):
        lanes_in = _round_up(max(c_cat, 1), 128)        # VMEM lane padding of x block
        x_bytes = 2 * tn * lanes_in * 2                 # double-buffered bf16 input
        tmp_bytes = tn * (hid_pad + c_pad) * 4          # f32 h / y temporaries
        w_bytes = (c_cat * hid_pad + hid_pad * c_pad) * 2 + (hid_pad + c_pad) * 4
        out_bytes = 2 * 8 * c_pad * 4
        return x_bytes + tmp_bytes + w_bytes + out_bytes

    tn = max(16, min(max_tile_n, _round_up(max(max_count, 1), 16)))
    while tn > 16 and footprint(tn) > budget:
        tn = max(16, _round_up(tn // 2, 16))
    vmem_limit = int(min(max(footprint(tn) * 1.4 + (4 << 20), 32 << 20), 60 << 20))
    return tn, vmem_limit


def _global_sa_kernel(counts_ref, offs_ref, fblk_ref, lblk_ref,
                      x_ref, w1_ref, b1_ref, w2_ref, b2_ref, out_ref,
                      *, tile_n, bf16_epilogue):
    """Grid = (num_batches, tiles_per_batch).

    Prefetch (SMEM, int32): counts, row offsets, first/last tile_n-block per batch.
    x_ref:  [tile_n, C_cat] bf16   block of the ORIGINAL (un-repacked) point array
    w1_ref: [C_cat, H_pad]  bf16,  b1_ref: [1, H_pad] (bf16 or f32)
    w2_ref: [H_pad, C_pad]  bf16,  b2_ref: [1, C_pad] f32
    out_ref:[8, C_pad] f32  per-batch partial maxima (VMEM-resident across t;
                            final 8-row reduce happens in the wrapper)
    """
    b = pl.program_id(0)
    t = pl.program_id(1)

    # Per-batch init (also gives empty batches a 0 row, matching scatter_max fill).
    @pl.when(t == 0)
    def _init():
        out_ref[...] = jnp.zeros_like(out_ref)

    count = counts_ref[b]
    first = fblk_ref[b]
    last = lblk_ref[b]

    # Skip out-of-range tiles entirely; their DMAs are no-ops (index_map clamps).
    @pl.when((count > 0) & (first + t <= last))
    def _compute():
        # --- MLP: Lin -> ReLU -> Lin -> ReLU (bf16 operands, f32 MXU accumulation).
        x = x_ref[...]                                                   # [tile_n, C_cat]
        h = jnp.dot(x, w1_ref[...], preferred_element_type=jnp.float32)
        if bf16_epilogue:
            h = jnp.maximum(h.astype(jnp.bfloat16) + b1_ref[...], 0)     # bf16 VPU path
        else:
            h = jnp.maximum(h + b1_ref[...], 0.0).astype(jnp.bfloat16)   # f32 VPU path
        y = jnp.dot(h, w2_ref[...], preferred_element_type=jnp.float32)
        y = jnp.maximum(y + b2_ref[...], 0.0)                            # [tile_n, C_pad] >= 0

        # Rows of this block belonging to batch b: [off - base, off + count - base).
        off = offs_ref[b]
        base = jnp.minimum(first + t, last) * tile_n
        lo = off - base
        hi = off + count - base
        is_partial = (lo > 0) | (hi < tile_n)

        def _fold(v):
            # 8 per-sublane partial maxima (VPU); cross-sublane reduce deferred.
            part = jnp.max(v.reshape(tile_n // 8, 8, -1), axis=0)        # [8, C_pad]
            out_ref[...] = jnp.maximum(out_ref[...], part)

        @pl.when(is_partial)
        def _masked():
            # Masking with 0 is the identity for a max of post-ReLU (>= 0) values.
            r = jax.lax.broadcasted_iota(jnp.int32, (tile_n, 1), 0)
            _fold(jnp.where((r >= lo) & (r < hi), y, 0.0))

        @pl.when(jnp.logical_not(is_partial))
        def _full():
            _fold(y)


def pointnet2_global_sa(x, pos, batch, w1, b1, w2, b2, *, num_batches,
                        max_tile_n=8192, bf16_epilogue=None):
    """JAX wrapper mirroring PointNet2GlobalSAModule.forward((x, pos, batch)).

    Assumes (as in PyG) `batch` is sorted and concrete — tile geometry is derived
    from the actual per-batch point counts (data-dependent host sync; under jit a
    static upper bound would be needed instead).
    """
    n = x.shape[0]
    c_cat = x.shape[1] + 3
    hid = w1.shape[1]
    c_out = w2.shape[1]
    hid_pad = _round_up(hid, 128)     # lane-dense; deliberately NOT padded past 128x
    c_pad = _round_up(c_out, 128)

    if bf16_epilogue is None:
        bf16_epilogue = _default_bf16_epilogue()

    batch_i32 = batch.astype(jnp.int32)
    counts = jnp.bincount(batch_i32, length=num_batches).astype(jnp.int32)     # [B]
    offsets = jnp.concatenate(
        [jnp.zeros((1,), jnp.int32), jnp.cumsum(counts)[:-1].astype(jnp.int32)])

    max_count = int(jnp.max(counts)) if num_batches > 0 else 0
    tile_n, vmem_limit = _pick_tile(max_count, c_cat, hid_pad, c_pad, max_tile_n)

    nblocks = -(-n // tile_n)
    first_blk = jnp.clip(offsets // tile_n, 0, nblocks - 1).astype(jnp.int32)
    last_blk = jnp.clip(jnp.maximum(first_blk, (offsets + counts - 1) // tile_n),
                        0, nblocks - 1).astype(jnp.int32)
    tiles_per_batch = int(jnp.max(last_blk - first_blk)) + 1

    # No segment repack: only a fused concat + bf16 cast remains on the host.
    x_cat = jnp.concatenate([x, pos], axis=1).astype(jnp.bfloat16)              # [N, C_cat]

    # Lane-dense (128-padded) weights; padded columns stay 0 through bias(0)+ReLU.
    w1_p = jnp.zeros((c_cat, hid_pad), jnp.bfloat16).at[:, :hid].set(w1.astype(jnp.bfloat16))
    w2_p = jnp.zeros((hid_pad, c_pad), jnp.bfloat16).at[:hid, :c_out].set(w2.astype(jnp.bfloat16))
    b1_dtype = jnp.bfloat16 if bf16_epilogue else jnp.float32
    b1_p = jnp.zeros((1, hid_pad), b1_dtype).at[:, :hid].set(b1.reshape(1, -1).astype(b1_dtype))
    b2_p = jnp.zeros((1, c_pad), jnp.float32).at[:, :c_out].set(b2.reshape(1, -1))

    def x_index_map(b, t, counts_ref, offs_ref, fblk_ref, lblk_ref):
        del counts_ref, offs_ref
        # Clamp to the batch's last block: skipped tail tiles re-use the previous
        # block index, so Pallas elides their DMA.
        return (jnp.minimum(fblk_ref[b] + t, lblk_ref[b]), 0)

    grid_spec = pltpu.PrefetchScalarGridSpec(
        num_scalar_prefetch=4,                         # counts, offsets, first/last blk
        grid=(num_batches, tiles_per_batch),
        in_specs=[
            pl.BlockSpec((tile_n, c_cat), x_index_map),
            pl.BlockSpec((c_cat, hid_pad), lambda b, t, *_: (0, 0)),
            pl.BlockSpec((1, hid_pad), lambda b, t, *_: (0, 0)),
            pl.BlockSpec((hid_pad, c_pad), lambda b, t, *_: (0, 0)),
            pl.BlockSpec((1, c_pad), lambda b, t, *_: (0, 0)),
        ],
        # One per-batch (8, C_pad) block of partial maxima, resident across t only,
        # so the batch axis can be "parallel" (sharded across v7x's 2 TensorCores).
        out_specs=pl.BlockSpec((None, 8, c_pad), lambda b, t, *_: (b, 0, 0)),
    )

    out_pad = pl.pallas_call(
        partial(_global_sa_kernel, tile_n=tile_n, bf16_epilogue=bf16_epilogue),
        out_shape=jax.ShapeDtypeStruct((num_batches, 8, c_pad), jnp.float32),
        grid_spec=grid_spec,
        compiler_params=pltpu.CompilerParams(
            dimension_semantics=("parallel", "arbitrary"),
            vmem_limit_bytes=vmem_limit,
        ),
    )(counts, offsets, first_blk, last_blk, x_cat, w1_p, b1_p, w2_p, b2_p)

    x1 = jnp.max(out_pad, axis=1)[:, :c_out]           # final 8-row reduce (tiny)
    pos1 = jnp.zeros((num_batches, 3), dtype=x1.dtype)
    batch1 = jnp.arange(num_batches, dtype=batch_i32.dtype)
    return x1, pos1, batch1


def _torch_linear_init(key, fan_in, fan_out):
    """Deterministic init mimicking torch.nn.Linear's U(-1/sqrt(fan_in), +)."""
    kw, kb = jax.random.split(key)
    bound = 1.0 / jnp.sqrt(jnp.float32(fan_in))
    w = jax.random.uniform(kw, (fan_in, fan_out), jnp.float32, -bound, bound)
    b = jax.random.uniform(kb, (fan_out,), jnp.float32, -bound, bound)
    return w, b


if __name__ == "__main__":
    # B=2 point clouds of unequal size (16 and 7 points) so both the full-tile
    # (unmasked) and the partial-tile (masked) paths are exercised, including a
    # block that extends past the end of the point array.
    B = 2
    COUNTS = (16, 7)
    N = sum(COUNTS)
    C_IN = 4           # per-point features
    C_CAT = C_IN + 3   # after concatenating xyz
    HID = 32
    C_OUT = 32

    key = jax.random.PRNGKey(0)
    kx, kp, k1, k2 = jax.random.split(key, 4)

    x = jax.random.normal(kx, (N, C_IN), jnp.float32)
    pos = jax.random.normal(kp, (N, 3), jnp.float32)
    batch = jnp.concatenate(
        [jnp.full((c,), i, jnp.int32) for i, c in enumerate(COUNTS)])   # [N], sorted

    # mlp = Seq(Lin(C_CAT, HID), ReLU(), Lin(HID, C_OUT), ReLU())
    # TODO(synk): BatchNorm1d / Dropout variants of the arbitrary `mlp` Sequential
    # are not modeled; a 2-layer Lin+ReLU MLP is used here.
    w1, b1 = _torch_linear_init(k1, C_CAT, HID)
    w2, b2 = _torch_linear_init(k2, HID, C_OUT)

    x1, pos1, batch1 = pointnet2_global_sa(
        x, pos, batch, w1, b1, w2, b2, num_batches=B)
    jax.block_until_ready((x1, pos1, batch1))

    # Reference in plain JAX, mirroring the kernel's bf16 rounding of streamed
    # operands (f32 accumulation), so the tolerance can stay tight-ish.
    bf = lambda a: a.astype(jnp.bfloat16).astype(jnp.float32)
    xc = bf(jnp.concatenate([x, pos], axis=1))
    h_ref = jnp.maximum(jnp.dot(xc, bf(w1), precision="highest") + b1, 0.0)
    y_ref = jnp.maximum(jnp.dot(bf(h_ref), bf(w2), precision="highest") + b2, 0.0)
    ref = jnp.stack([jnp.max(jnp.where((batch == b)[:, None], y_ref, 0.0), axis=0)
                     for b in range(B)])

    assert x1.shape == (B, C_OUT) and pos1.shape == (B, 3) and batch1.shape == (B,)
    err = float(jnp.max(jnp.abs(x1 - ref)))
    assert jnp.allclose(x1, ref, atol=2e-2, rtol=2e-2), err
    assert jnp.all(pos1 == 0.0) and jnp.all(batch1 == jnp.arange(B))

    print("KERNEL_OK")
</pallas_src>

<mosaic_0001>
module attributes {stable_mosaic.version = 11 : i64} {
  func.func @_global_sa_kernel(%arg0: i32, %arg1: i32, %arg2: memref<2xi32, #tpu.memory_space<smem>>, %arg3: memref<2xi32, #tpu.memory_space<smem>>, %arg4: memref<2xi32, #tpu.memory_space<smem>>, %arg5: memref<2xi32, #tpu.memory_space<smem>>, %arg6: memref<16x7xbf16, #tpu.memory_space<vmem>>, %arg7: memref<7x128xbf16, #tpu.memory_space<vmem>>, %arg8: memref<1x128xbf16, #tpu.memory_space<vmem>>, %arg9: memref<128x128xbf16, #tpu.memory_space<vmem>>, %arg10: memref<1x128xf32, #tpu.memory_space<vmem>>, %arg11: memref<1x8x128xf32, #tpu.memory_space<vmem>>) attributes {dimension_semantics = [#tpu.dimension_semantics<parallel>, #tpu.dimension_semantics<arbitrary>], iteration_bounds = array<i64: 2, 1>, scalar_prefetch = 4 : i64, scratch_operands = 0 : i64, tpu.core_type = #tpu.core_type<tc>, window_params = [{transform_indices = @transform_0, window_bounds = array<i64: 16, 7>}, {pipeline_mode = #tpu.pipeline_mode<synchronous>, transform_indices = @transform_1, window_bounds = array<i64: 7, 128>}, {pipeline_mode = #tpu.pipeline_mode<synchronous>, transform_indices = @transform_2, window_bounds = array<i64: 1, 128>}, {pipeline_mode = #tpu.pipeline_mode<synchronous>, transform_indices = @transform_3, window_bounds = array<i64: 128, 128>}, {pipeline_mode = #tpu.pipeline_mode<synchronous>, transform_indices = @transform_4, window_bounds = array<i64: 1, 128>}, {transform_indices = @transform_5, window_bounds = array<i64: 1, 8, 128>}]} {
    %c0_i32 = arith.constant 0 : i32
    %0 = arith.cmpi eq, %arg1, %c0_i32 : i32
    %1 = arith.extui %0 : i1 to i32
    %c0_i32_0 = arith.constant 0 : i32
    %2 = arith.cmpi ne, %1, %c0_i32_0 : i32
    scf.if %2 {
      %cst = arith.constant 0.000000e+00 : f32
      %15 = vector.broadcast %cst : f32 to vector<8x128xf32>
      %c0 = arith.constant 0 : index
      %c0_3 = arith.constant 0 : index
      %c0_4 = arith.constant 0 : index
      %16 = vector.load %arg11[%c0, %c0_3, %c0_4] : memref<1x8x128xf32, #tpu.memory_space<vmem>>, vector<1x8x128xf32>
      %17 = vector.shape_cast %16 : vector<1x8x128xf32> to vector<8x128xf32>
      %18 = vector.shape_cast %15 : vector<8x128xf32> to vector<1x8x128xf32>
      tpu.vector_store %arg11[%c0, %c0_3, %c0_4], %18 {strides = array<i32>} : memref<1x8x128xf32, #tpu.memory_space<vmem>>, vector<1x8x128xf32>,
    } else {
    }
    %3 = arith.index_cast %arg0 : i32 to index
    %4 = memref.load %arg2[%3] : memref<2xi32, #tpu.memory_space<smem>>
    %5 = arith.index_cast %arg0 : i32 to index
    %6 = memref.load %arg4[%5] : memref<2xi32, #tpu.memory_space<smem>>
    %7 = arith.index_cast %arg0 : i32 to index
    %8 = memref.load %arg5[%7] : memref<2xi32, #tpu.memory_space<smem>>
    %c0_i32_1 = arith.constant 0 : i32
    %9 = arith.cmpi sgt, %4, %c0_i32_1 : i32
    %10 = arith.addi %6, %arg1 : i32
    %11 = arith.cmpi sle, %10, %8 : i32
    %12 = arith.andi %9, %11 : i1
    %13 = arith.extui %12 : i1 to i32
    %c0_i32_2 = arith.constant 0 : i32
    %14 = arith.cmpi ne, %13, %c0_i32_2 : i32
    scf.if %14 {
      %c0 = arith.constant 0 : index
      %c0_3 = arith.constant 0 : index
      %15 = vector.load %arg6[%c0, %c0_3] : memref<16x7xbf16, #tpu.memory_space<vmem>>, vector<16x7xbf16>
      %c0_4 = arith.constant 0 : index
      %c0_5 = arith.constant 0 : index
      %16 = vector.load %arg7[%c0_4, %c0_5] : memref<7x128xbf16, #tpu.memory_space<vmem>>, vector<7x128xbf16>
      %cst = arith.constant dense<0.000000e+00> : vector<16x128xf32>
      %17 = tpu.matmul %15, %16, %cst {dimension_numbers = #tpu.dot_dimension_numbers<[1], [0], [0], [1], [0, 0, 1, 1], [], []>} : vector<16x7xbf16>, vector<7x128xbf16>, vector<16x128xf32> -> vector<16x128xf32>
      %18 = arith.truncf %17 : vector<16x128xf32> to vector<16x128xbf16>
      %c0_6 = arith.constant 0 : index
      %c0_7 = arith.constant 0 : index
      %19 = vector.load %arg8[%c0_6, %c0_7] : memref<1x128xbf16, #tpu.memory_space<vmem>>, vector<1x128xbf16>
      %20 = vector.broadcast %19 : vector<1x128xbf16> to vector<16x128xbf16>
      %21 = arith.addf %18, %20 : vector<16x128xbf16>
      %cst_8 = arith.constant 0.000000e+00 : bf16
      %22 = vector.broadcast %cst_8 : bf16 to vector<16x128xbf16>
      %23 = arith.maximumf %21, %22 : vector<16x128xbf16>
      %c0_9 = arith.constant 0 : index
      %c0_10 = arith.constant 0 : index
      %24 = vector.load %arg9[%c0_9, %c0_10] : memref<128x128xbf16, #tpu.memory_space<vmem>>, vector<128x128xbf16>
      %cst_11 = arith.constant dense<0.000000e+00> : vector<16x128xf32>
      %25 = tpu.matmul %23, %24, %cst_11 {dimension_numbers = #tpu.dot_dimension_numbers<[1], [0], [0], [1], [0, 0, 1, 1], [], []>} : vector<16x128xbf16>, vector<128x128xbf16>, vector<16x128xf32> -> vector<16x128xf32>
      %c0_12 = arith.constant 0 : index
      %c0_13 = arith.constant 0 : index
      %26 = vector.load %arg10[%c0_12, %c0_13] : memref<1x128xf32, #tpu.memory_space<vmem>>, vector<1x128xf32>
      %27 = vector.broadcast %26 : vector<1x128xf32> to vector<16x128xf32>
      %28 = arith.addf %25, %27 : vector<16x128xf32>
      %cst_14 = arith.constant 0.000000e+00 : f32
      %29 = vector.broadcast %cst_14 : f32 to vector<16x128xf32>
      %30 = arith.maximumf %28, %29 : vector<16x128xf32>
      %31 = arith.index_cast %arg0 : i32 to index
      %32 = memref.load %arg3[%31] : memref<2xi32, #tpu.memory_space<smem>>
      %33 = arith.addi %6, %arg1 : i32
      %34 = arith.minsi %33, %8 : i32
      %c16_i32 = arith.constant 16 : i32
      %35 = arith.muli %34, %c16_i32 : i32
      %36 = arith.subi %32, %35 : i32
      %37 = arith.addi %32, %4 : i32
      %38 = arith.subi %37, %35 : i32
      %c0_i32_15 = arith.constant 0 : i32
      %39 = arith.cmpi sgt, %36, %c0_i32_15 : i32
      %c16_i32_16 = arith.constant 16 : i32
      %40 = arith.cmpi slt, %38, %c16_i32_16 : i32
      %41 = arith.ori %39, %40 : i1
      %42 = arith.extui %41 : i1 to i32
      %c0_i32_17 = arith.constant 0 : i32
      %43 = arith.cmpi ne, %42, %c0_i32_17 : i32
      scf.if %43 {
        %47 = tpu.iota {dimensions = array<i32: 0>} : vector<16x1xi32>
        %48 = vector.broadcast %36 : i32 to vector<16x1xi32>
        %49 = arith.cmpi sge, %47, %48 : vector<16x1xi32>
        %50 = vector.broadcast %38 : i32 to vector<16x1xi32>
        %51 = arith.cmpi slt, %47, %50 : vector<16x1xi32>
        %52 = arith.andi %49, %51 : vector<16x1xi1>
        %cst_19 = arith.constant 0.000000e+00 : f32
        %53 = vector.shape_cast %52 : vector<16x1xi1> to vector<16x1xi1>
        %54 = vector.broadcast %53 : vector<16x1xi1> to vector<16x128xi1>
        %55 = vector.broadcast %cst_19 : f32 to vector<16x128xf32>
        %56 = arith.select %54, %30, %55 : vector<16x128xi1>, vector<16x128xf32>
        %57 = vector.shape_cast %56 : vector<16x128xf32> to vector<2x8x128xf32>
        %cst_20 = arith.constant dense<0xFF800000> : vector<8x128xf32>
        %58 = vector.multi_reduction <maximumf>, %57, %cst_20 [0] : vector<2x8x128xf32> to vector<8x128xf32>
        %c0_21 = arith.constant 0 : index
        %c0_22 = arith.constant 0 : index
        %c0_23 = arith.constant 0 : index
        %59 = vector.load %arg11[%c0_21, %c0_22, %c0_23] : memref<1x8x128xf32, #tpu.memory_space<vmem>>, vector<1x8x128xf32>
        %60 = vector.shape_cast %59 : vector<1x8x128xf32> to vector<8x128xf32>
        %61 = arith.maximumf %60, %58 : vector<8x128xf32>
        %c0_24 = arith.constant 0 : index
        %c0_25 = arith.constant 0 : index
        %c0_26 = arith.constant 0 : index
        %62 = vector.load %arg11[%c0_24, %c0_25, %c0_26] : memref<1x8x128xf32, #tpu.memory_space<vmem>>, vector<1x8x128xf32>
        %63 = vector.shape_cast %62 : vector<1x8x128xf32> to vector<8x128xf32>
        %64 = vector.shape_cast %61 : vector<8x128xf32> to vector<1x8x128xf32>
        tpu.vector_store %arg11[%c0_24, %c0_25, %c0_26], %64 {strides = array<i32>} : memref<1x8x128xf32, #tpu.memory_space<vmem>>, vector<1x8x128xf32>,
      } else {
      }
      %true = arith.constant true
      %44 = arith.xori %41, %true : i1
      %45 = arith.extui %44 : i1 to i32
      %c0_i32_18 = arith.constant 0 : i32
      %46 = arith.cmpi ne, %45, %c0_i32_18 : i32
      scf.if %46 {
        %47 = vector.shape_cast %30 : vector<16x128xf32> to vector<2x8x128xf32>
        %cst_19 = arith.constant dense<0xFF800000> : vector<8x128xf32>
        %48 = vector.multi_reduction <maximumf>, %47, %cst_19 [0] : vector<2x8x128xf32> to vector<8x128xf32>
        %c0_20 = arith.constant 0 : index
        %c0_21 = arith.constant 0 : index
        %c0_22 = arith.constant 0 : index
        %49 = vector.load %arg11[%c0_20, %c0_21, %c0_22] : memref<1x8x128xf32, #tpu.memory_space<vmem>>, vector<1x8x128xf32>
        %50 = vector.shape_cast %49 : vector<1x8x128xf32> to vector<8x128xf32>
        %51 = arith.maximumf %50, %48 : vector<8x128xf32>
        %c0_23 = arith.constant 0 : index
        %c0_24 = arith.constant 0 : index
        %c0_25 = arith.constant 0 : index
        %52 = vector.load %arg11[%c0_23, %c0_24, %c0_25] : memref<1x8x128xf32, #tpu.memory_space<vmem>>, vector<1x8x128xf32>
        %53 = vector.shape_cast %52 : vector<1x8x128xf32> to vector<8x128xf32>
        %54 = vector.shape_cast %51 : vector<8x128xf32> to vector<1x8x128xf32>
        tpu.vector_store %arg11[%c0_23, %c0_24, %c0_25], %54 {strides = array<i32>} : memref<1x8x128xf32, #tpu.memory_space<vmem>>, vector<1x8x128xf32>,
      } else {
      }
    } else {
    }
    return
  }
  func.func @transform_0(%arg0: i32, %arg1: i32, %arg2: memref<2xi32, #tpu.memory_space<smem>>, %arg3: memref<2xi32, #tpu.memory_space<smem>>, %arg4: memref<2xi32, #tpu.memory_space<smem>>, %arg5: memref<2xi32, #tpu.memory_space<smem>>) -> (i32, i32) {
    %0 = arith.index_cast %arg0 : i32 to index
    %1 = memref.load %arg4[%0] : memref<2xi32, #tpu.memory_space<smem>>
    %2 = arith.addi %1, %arg1 : i32
    %3 = arith.index_cast %arg0 : i32 to index
    %4 = memref.load %arg5[%3] : memref<2xi32, #tpu.memory_space<smem>>
    %5 = arith.minsi %2, %4 : i32
    %c0_i32 = arith.constant 0 : i32
    %c0_i32_0 = arith.constant 0 : i32
    return %5, %c0_i32 : i32, i32
  }
  func.func @transform_1(%arg0: i32, %arg1: i32, %arg2: memref<2xi32, #tpu.memory_space<smem>>, %arg3: memref<2xi32, #tpu.memory_space<smem>>, %arg4: memref<2xi32, #tpu.memory_space<smem>>, %arg5: memref<2xi32, #tpu.memory_space<smem>>) -> (i32, i32) {
    %c0_i32 = arith.constant 0 : i32
    %c0_i32_0 = arith.constant 0 : i32
    %c0_i32_1 = arith.constant 0 : i32
    return %c0_i32, %c0_i32_0 : i32, i32
  }
  func.func @transform_2(%arg0: i32, %arg1: i32, %arg2: memref<2xi32, #tpu.memory_space<smem>>, %arg3: memref<2xi32, #tpu.memory_space<smem>>, %arg4: memref<2xi32, #tpu.memory_space<smem>>, %arg5: memref<2xi32, #tpu.memory_space<smem>>) -> (i32, i32) {
    %c0_i32 = arith.constant 0 : i32
    %c0_i32_0 = arith.constant 0 : i32
    %c0_i32_1 = arith.constant 0 : i32
    return %c0_i32, %c0_i32_0 : i32, i32
  }
  func.func @transform_3(%arg0: i32, %arg1: i32, %arg2: memref<2xi32, #tpu.memory_space<smem>>, %arg3: memref<2xi32, #tpu.memory_space<smem>>, %arg4: memref<2xi32, #tpu.memory_space<smem>>, %arg5: memref<2xi32, #tpu.memory_space<smem>>) -> (i32, i32) {
    %c0_i32 = arith.constant 0 : i32
    %c0_i32_0 = arith.constant 0 : i32
    %c0_i32_1 = arith.constant 0 : i32
    return %c0_i32, %c0_i32_0 : i32, i32
  }
  func.func @transform_4(%arg0: i32, %arg1: i32, %arg2: memref<2xi32, #tpu.memory_space<smem>>, %arg3: memref<2xi32, #tpu.memory_space<smem>>, %arg4: memref<2xi32, #tpu.memory_space<smem>>, %arg5: memref<2xi32, #tpu.memory_space<smem>>) -> (i32, i32) {
    %c0_i32 = arith.constant 0 : i32
    %c0_i32_0 = arith.constant 0 : i32
    %c0_i32_1 = arith.constant 0 : i32
    return %c0_i32, %c0_i32_0 : i32, i32
  }
  func.func @transform_5(%arg0: i32, %arg1: i32, %arg2: memref<2xi32, #tpu.memory_space<smem>>, %arg3: memref<2xi32, #tpu.memory_space<smem>>, %arg4: memref<2xi32, #tpu.memory_space<smem>>, %arg5: memref<2xi32, #tpu.memory_space<smem>>) -> (i32, i32, i32) {
    %c0_i32 = arith.constant 0 : i32
    %c0_i32_0 = arith.constant 0 : i32
    %c0_i32_1 = arith.constant 0 : i32
    return %arg0, %c0_i32, %c0_i32_0 : i32, i32, i32
  }
}

</mosaic_0001>

<llo_original>
// kernel: tpu_custom_call.1
$region0: #{tpu_custom_call.1}
  #allocation0 [shape = 'u32[]', space=smem, size = 0x4, offset = 0x4, fixed_abs, tag = 'smem constant byte address 0x4 - core index']
  #allocation1 [shape = 'u32[144,128]{1,0:T(1,128)}', space=vmem, size = 0x12000, scoped, tag = 'internal scratch']
  #allocation2 [shape = 's32[1]{0}', space=sflag, size = 0x4, scoped, tag = 'scoped memory for tpu_custom_call.1']
  #allocation3 [shape = 'u8[512]{0}', space=smem, size = 0x200, scoped, tag = 'prefetched SMEM operand 0']
  #allocation4 [shape = 'u8[512]{0}', space=smem, size = 0x200, scoped, tag = 'prefetched SMEM operand 1']
  #allocation5 [shape = 'u8[512]{0}', space=smem, size = 0x200, scoped, tag = 'prefetched SMEM operand 2']
  #allocation6 [shape = 'u8[512]{0}', space=smem, size = 0x200, scoped, tag = 'prefetched SMEM operand 3']
  %s0 = inlined_call_operand.vmem [shape: s32[2], index: 0, kind: input, shape index: {}]
  %s1 = inlined_call_operand.vmem [shape: s32[2], index: 1, kind: input, shape index: {}]
  %s2 = inlined_call_operand.vmem [shape: s32[2], index: 2, kind: input, shape index: {}]
  %s3 = inlined_call_operand.vmem [shape: s32[2], index: 3, kind: input, shape index: {}]
  %s4 = inlined_call_operand.vmem [shape: bf16[23,7], index: 4, kind: input, shape index: {}]
  %s5 = inlined_call_operand.vmem [shape: bf16[7,128], index: 5, kind: input, shape index: {}]
  %s6 = inlined_call_operand.vmem [shape: bf16[1,128], index: 6, kind: input, shape index: {}]
  %s7 = inlined_call_operand.hbm [shape: bf16[128,128], index: 7, kind: input, shape index: {}]
  %s8 = inlined_call_operand.vmem [shape: f32[1,128], index: 8, kind: input, shape index: {}]
  %s9 = inlined_call_operand.hbm [shape: f32[2,8,128], index: 9, kind: output, shape index: {}]
  %s10 = sld [smem:[#allocation0]]
  $region73: #{tpu_custom_call.1} parent=0
    _
  %s12 = ssub.s32 1, %s10
  %s13 = scalar_select 0, %s12, %s10
  %s14 = sshll.u32 %s0, 4
  %s15 = int_to_ptr.vmem [resolvable:$true] %s14
  %17 = dma.vmem_to_smem %s15, 16, [#allocation3], [#allocation2]
  %s18 = sshll.u32 %s1, 4
  %s19 = int_to_ptr.vmem [resolvable:$true] %s18
  %21 = dma.vmem_to_smem %s19, 16, [#allocation4], [#allocation2]
  %s22 = sshll.u32 %s2, 4
  %s23 = int_to_ptr.vmem [resolvable:$true] %s22
  %25 = dma.vmem_to_smem %s23, 16, [#allocation5], [#allocation2]
  %s26 = sshll.u32 %s3, 4
  %s27 = int_to_ptr.vmem [resolvable:$true] %s26
  %29 = dma.vmem_to_smem %s27, 16, [#allocation6], [#allocation2]
  %30 = dma.done [#allocation2], 64
  %31 = sfence
  $region1: #{tpu_custom_call.1} parent=0
    #allocation7 [shape = 'u8[32768]{0}', space=vmem, size = 0x8000, scoped, tag = 'input window, operand 7, single buffered']
    #allocation8 [shape = 's32[2]{0}', space=sflag, size = 0x8, scoped, tag = 'scoped memory for tpu_custom_call.1']
    #allocation9 [shape = 's32[2]{0}', space=sflag, size = 0x8, scoped, tag = 'scoped memory for tpu_custom_call.1']
    #allocation10 [shape = 'u8[8192]{0}', space=vmem, size = 0x2000, scoped, tag = 'output window, operand 0']
    %32 = vsyncpa [#allocation8], 0
    %33 = vsyncpa [#allocation9], 0
    %s34 = scalar_lea.sflag [#allocation9], 1
    %35 = vsyncpa %s34, 0
    loop: start=0, step=1, limit=4
    $region2: #{tpu_custom_call.1} parent=1 // loop_pre_header
      _
    $region3: #{tpu_custom_call.1} parent=1 // loop_header
      %s37 = sphi 0, %s41
      %p38 = scmp.ge.s32.totalorder %s37, 4
      %s44 = sphi 0, %s56
      %s45 = sphi 0, %s52
      %s46 = sphi 0, %s44
      %s47 = sphi 0, %s45
      %s48 = sphi 0, %s46
      %s49 = sphi 0, %s47
      %s69 = sphi 0, %s71
      %s72 = sphi 0, %s69
      %s73 = sphi 0, %s72
      %s89 = sphi 0, %s73
      %s93 = sphi 0, %s93
      %s95 = sphi 0, %s93
      %s96 = sphi 0, %s95
      %s110 = sphi 0, %s96
      %s114 = sphi 0, %s114
      %s116 = sphi 0, %s114
      %s117 = sphi 0, %s116
      %s131 = sphi 0, %s117
      %s135 = sphi 0, %s135
      %s137 = sphi 0, %s135
      %s138 = sphi 0, %s137
      %s152 = sphi 0, %s138
      %s156 = sphi 0, %s156
      %s158 = sphi 0, %s156
      %s159 = sphi 0, %s158
      %s173 = sphi 0, %s159
      %s179 = sphi 0, %s181
      %s182 = sphi 0, %s179
      %s183 = sphi 0, %s182
      %s199 = sphi 0, %s183
    $region4: #{tpu_custom_call.1} parent=1 // loop_header_branch
      %40 = sbr.rel (%p38) target = $region8
    $region5: #{tpu_custom_call.1} parent=1 // loop_body
      %s42 = ssub.s32 %s37, 1
      %s43 = ssub.s32 %s37, 2
      %s50 = sadd.s32 1, %s45
      %p51 = scmp.ge.s32.totalorder %s50, 1
      %s52 = scalar_select %p51, 0, %s50
      %s53 = sadd.s32 1, %s44
      %s54 = scalar_select %p51, %s53, %s44
      %p55 = scmp.ge.s32.totalorder %s54, 2
      %s56 = scalar_select %p55, 0, %s54
      %s57 = sld [smem:[#allocation5 + %s44]]
      %s58 = sadd.s32 %s57, %s45
      %s59 = sld [smem:[#allocation6 + %s44]]
      %p60 = scmp.lt.s32.totalorder %s58, %s59
      %s61 = scalar_select %p60, %s58, %s59
      %s62 = sld [smem:[#allocation5 + %s56]]
      %s63 = sadd.s32 %s62, %s52
      %s64 = sld [smem:[#allocation6 + %s56]]
      %p65 = scmp.lt.s32.totalorder %s63, %s64
      %s66 = scalar_select %p65, %s63, %s64
      %s67 = ssub.s32 %s61, %s66
      %p68 = scmp.eq.s32.totalorder %s67, 0
      %s70 = sadd.s32 %s69, 1
      %s71 = scalar_select %p68, %s69, %s70
      %p74 = pneg %p68
      %p75 = scmp.eq.s32.totalorder %s37, 1
      %p76 = por %p74, %p75
      %p77 = scmp.ne.s32.totalorder %s69, %s72
      %p78 = scmp.eq.s32.totalorder %s37, 0
      %p79 = por %p77, %p78
      %p80 = scmp.ne.s32.totalorder %s69, %s72
      %p81 = scmp.eq.s32.totalorder %s42, 1
      %p82 = por %p80, %p81
      %p83 = scmp.ne.s32.totalorder %s72, %s73
      %p84 = scmp.eq.s32.totalorder %s42, 0
      %p85 = por %p83, %p84
      %p86 = scmp.ne.s32.totalorder %s72, %s73
      %p87 = scmp.eq.s32.totalorder %s43, 1
      %p88 = por %p86, %p87
      %p90 = scmp.ne.s32.totalorder %s73, %s89
      %p91 = scmp.eq.s32.totalorder %s43, 0
      %p92 = por %p90, %p91
      %s94 = sadd.s32 %s93, 1
      %p97 = scmp.eq.s32.totalorder %s37, 1
      %p98 = scmp.ne.s32.totalorder %s93, %s95
      %p99 = scmp.eq.s32.totalorder %s37, 0
      %p100 = por %p98, %p99
      %p101 = scmp.ne.s32.totalorder %s93, %s95
      %p102 = scmp.eq.s32.totalorder %s42, 1
      %p103 = por %p101, %p102
      %p104 = scmp.ne.s32.totalorder %s95, %s96
      %p105 = scmp.eq.s32.totalorder %s42, 0
      %p106 = por %p104, %p105
      %p107 = scmp.ne.s32.totalorder %s95, %s96
      %p108 = scmp.eq.s32.totalorder %s43, 1
      %p109 = por %p107, %p108
      %p111 = scmp.ne.s32.totalorder %s96, %s110
      %p112 = scmp.eq.s32.totalorder %s43, 0
      %p113 = por %p111, %p112
      %s115 = sadd.s32 %s114, 1
      %p118 = scmp.eq.s32.totalorder %s37, 1
      %p119 = scmp.ne.s32.totalorder %s114, %s116
      %p120 = scmp.eq.s32.totalorder %s37, 0
      %p121 = por %p119, %p120
      %p122 = scmp.ne.s32.totalorder %s114, %s116
      %p123 = scmp.eq.s32.totalorder %s42, 1
      %p124 = por %p122, %p123
      %p125 = scmp.ne.s32.totalorder %s116, %s117
      %p126 = scmp.eq.s32.totalorder %s42, 0
      %p127 = por %p125, %p126
      %p128 = scmp.ne.s32.totalorder %s116, %s117
      %p129 = scmp.eq.s32.totalorder %s43, 1
      %p130 = por %p128, %p129
      %p132 = scmp.ne.s32.totalorder %s117, %s131
      %p133 = scmp.eq.s32.totalorder %s43, 0
      %p134 = por %p132, %p133
      %s136 = sadd.s32 %s135, 1
      %p139 = scmp.eq.s32.totalorder %s37, 1
      %p140 = scmp.ne.s32.totalorder %s135, %s137
      %p141 = scmp.eq.s32.totalorder %s37, 0
      %p142 = por %p140, %p141
      %p143 = scmp.ne.s32.totalorder %s135, %s137
      %p144 = scmp.eq.s32.totalorder %s42, 1
      %p145 = por %p143, %p144
      %p146 = scmp.ne.s32.totalorder %s137, %s138
      %p147 = scmp.eq.s32.totalorder %s42, 0
      %p148 = por %p146, %p147
      %p149 = scmp.ne.s32.totalorder %s137, %s138
      %p150 = scmp.eq.s32.totalorder %s43, 1
      %p151 = por %p149, %p150
      %p153 = scmp.ne.s32.totalorder %s138, %s152
      %p154 = scmp.eq.s32.totalorder %s43, 0
      %p155 = por %p153, %p154
      %s157 = sadd.s32 %s156, 1
      %p160 = scmp.eq.s32.totalorder %s37, 1
      %p161 = scmp.ne.s32.totalorder %s156, %s158
      %p162 = scmp.eq.s32.totalorder %s37, 0
      %p163 = por %p161, %p162
      %p164 = scmp.ne.s32.totalorder %s156, %s158
      %p165 = scmp.eq.s32.totalorder %s42, 1
      %p166 = por %p164, %p165
      %p167 = scmp.ne.s32.totalorder %s158, %s159
      %p168 = scmp.eq.s32.totalorder %s42, 0
      %p169 = por %p167, %p168
      %p170 = scmp.ne.s32.totalorder %s158, %s159
      %p171 = scmp.eq.s32.totalorder %s43, 1
      %p172 = por %p170, %p171
      %p174 = scmp.ne.s32.totalorder %s159, %s173
      %p175 = scmp.eq.s32.totalorder %s43, 0
      %p176 = por %p174, %p175
      %s177 = ssub.s32 %s44, %s56
      %p178 = scmp.eq.s32.totalorder %s177, 0
      %s180 = sadd.s32 %s179, 1
      %s181 = scalar_select %p178, %s179, %s180
      %p184 = pneg %p178
      %p185 = scmp.eq.s32.totalorder %s37, 1
      %p186 = por %p184, %p185
      %p187 = scmp.ne.s32.totalorder %s179, %s182
      %p188 = scmp.eq.s32.totalorder %s37, 0
      %p189 = por %p187, %p188
      %p190 = scmp.ne.s32.totalorder %s179, %s182
      %p191 = scmp.eq.s32.totalorder %s42, 1
      %p192 = por %p190, %p191
      %p193 = scmp.ne.s32.totalorder %s182, %s183
      %p194 = scmp.eq.s32.totalorder %s42, 0
      %p195 = por %p193, %p194
      %p196 = scmp.ne.s32.totalorder %s182, %s183
      %p197 = scmp.eq.s32.totalorder %s43, 1
      %p198 = por %p196, %p197
      %p200 = scmp.ne.s32.totalorder %s183, %s199
      %p201 = scmp.eq.s32.totalorder %s43, 0
      %p202 = por %p200, %p201
      %p203 = scmp.le.s32.totalorder 1, %s37
      %p204 = scmp.lt.s32.totalorder %s37, 3
      %p205 = pnand %p203, %p204
      %p206 = pneg %p205
      // Predicated region
      $region9: #{tpu_custom_call.1} parent=5 // pred_check
        _
      $region10: #{tpu_custom_call.1} parent=5 // pred_check_branch
        %208 = sbr.rel (%p205) target = $region12
      $region11: #{tpu_custom_call.1} parent=5 // pred_region
        %s209 = ssub.s32 %s37, 1
        // Predicated region
        $region13: #{tpu_custom_call.1} parent=11 // pred_check
          %p210 = pneg %p106
        $region14: #{tpu_custom_call.1} parent=11 // pred_check_branch
          %212 = sbr.rel (%p210) target = $region16
        $region15: #{tpu_custom_call.1} parent=11 // pred_region
          _
        $region16: #{tpu_custom_call.1} parent=11 // pred_fallthru
          _
        // Predicated region
        $region17: #{tpu_custom_call.1} parent=11 // pred_check
          %p213 = pneg %p127
        $region18: #{tpu_custom_call.1} parent=11 // pred_check_branch
          %215 = sbr.rel (%p213) target = $region20
        $region19: #{tpu_custom_call.1} parent=11 // pred_region
          _
        $region20: #{tpu_custom_call.1} parent=11 // pred_fallthru
          _
        // Predicated region
        $region21: #{tpu_custom_call.1} parent=11 // pred_check
          %p216 = pneg %p148
        $region22: #{tpu_custom_call.1} parent=11 // pred_check_branch
          %218 = sbr.rel (%p216) target = $region24
        $region23: #{tpu_custom_call.1} parent=11 // pred_region
          %s220 = ssub.s32 1024, 1024
          %221 = vsyncadd [#allocation8], %s220
          %s222 = sshll.u32 [#allocation7], 4
          %s223 = int_to_ptr.vmem [resolvable:$true] %s222
          %228 = dma.hbm_to_vmem [thread:$0]  %s7, 1024, %s223, [#allocation8], 64, 64, 4
        $region24: #{tpu_custom_call.1} parent=11 // pred_fallthru
          _
        // Predicated region
        $region25: #{tpu_custom_call.1} parent=11 // pred_check
          %p229 = pneg %p169
        $region26: #{tpu_custom_call.1} parent=11 // pred_check_branch
          %231 = sbr.rel (%p229) target = $region28
        $region27: #{tpu_custom_call.1} parent=11 // pred_region
          _
        $region28: #{tpu_custom_call.1} parent=11 // pred_fallthru
          _
      $region12: #{tpu_custom_call.1} parent=5 // pred_fallthru
        _
      %p232 = scmp.lt.s32.totalorder %s37, 2
      // Predicated region
      $region29: #{tpu_custom_call.1} parent=5 // pred_check
        %p233 = pneg %p232
      $region30: #{tpu_custom_call.1} parent=5 // pred_check_branch
        %235 = sbr.rel (%p233) target = $region32
      $region31: #{tpu_custom_call.1} parent=5 // pred_region
        // Predicated region
        $region33: #{tpu_custom_call.1} parent=31 // pred_check
          %p236 = pneg %p79
        $region34: #{tpu_custom_call.1} parent=31 // pred_check_branch
          %238 = sbr.rel (%p236) target = $region36
        $region35: #{tpu_custom_call.1} parent=31 // pred_region
          %s239 = sld [smem:[#allocation5 + %s44]]
          %s240 = sadd.s32 %s239, %s45
          %s241 = sld [smem:[#allocation6 + %s44]]
          %p242 = scmp.lt.s32.totalorder %s240, %s241
          %s243 = scalar_select %p242, %s240, %s241
          %s244 = smul.u32 2, %s243
          %s245 = ssub.s32 3, %s244
          %p246 = scmp.lt.s32.totalorder %s245, 2
          %s247 = scalar_select %p246, %s245, 2
          %s248 = smul.u32 64, %s247
          %p249 = scmp.lt.s32.totalorder %s244, 2
          %s250 = scalar_select %p249, %s244, 2
          %s251 = smul.addr %s250, 4
          %s252 = scalar_lea.vmem %s4, %s251
          %s253 = sld [smem:[#allocation5 + %s44]]
          %s254 = sadd.s32 %s253, %s45
          %s255 = sld [smem:[#allocation6 + %s44]]
          %p256 = scmp.lt.s32.totalorder %s254, %s255
          %s257 = scalar_select %p256, %s254, %s255
          %s258 = smul.u32 2, %s257
          %s259 = ssub.s32 3, %s258
          %p260 = scmp.lt.s32.totalorder %s259, 2
          %s261 = scalar_select %p260, %s259, 2
          %s262 = smul.u32 64, %s261
        $region36: #{tpu_custom_call.1} parent=31 // pred_fallthru
          _
      $region32: #{tpu_custom_call.1} parent=5 // pred_fallthru
        _
      %p263 = scmp.le.s32.totalorder 1, %s37
      %p264 = scmp.lt.s32.totalorder %s37, 3
      %p265 = pnand %p263, %p264
      %p266 = pneg %p265
      // Predicated region
      $region37: #{tpu_custom_call.1} parent=5 // pred_check
        _
      $region38: #{tpu_custom_call.1} parent=5 // pred_check_branch
        %268 = sbr.rel (%p265) target = $region40
      $region39: #{tpu_custom_call.1} parent=5 // pred_region
        %s269 = ssub.s32 %s37, 1
        // Predicated region
        $region41: #{tpu_custom_call.1} parent=39 // pred_check
          %p270 = pneg %p148
        $region42: #{tpu_custom_call.1} parent=39 // pred_check_branch
          %272 = sbr.rel (%p270) target = $region44
        $region43: #{tpu_custom_call.1} parent=39 // pred_region
          %273 = dma.done [#allocation8], 1024
        $region44: #{tpu_custom_call.1} parent=39 // pred_fallthru
          _
        %s274 = sld [smem:[#allocation5 + %s46]]
        %s275 = sadd.s32 %s274, %s47
        %s276 = sld [smem:[#allocation6 + %s46]]
        %p277 = scmp.lt.s32.totalorder %s275, %s276
        %s278 = scalar_select %p277, %s275, %s276
        %s279 = smul.u32 2, %s278
        %s280 = ssub.s32 3, %s279
        %p281 = scmp.lt.s32.totalorder %s280, 2
        %s282 = scalar_select %p281, %s280, 2
        %s283 = smul.u32 64, %s282
        %p284 = scmp.lt.s32.totalorder %s279, 2
        %s285 = scalar_select %p284, %s279, 2
        %s286 = smul.addr %s285, 4
        %s287 = scalar_lea.vmem %s4, %s286
        %p288 = pneg %p85
        %p289 = pneg %p82
        %p290 = pneg %p106
        %p291 = pneg %p103
        %p292 = pneg %p127
        %p293 = pneg %p124
        %p294 = pneg %p148
        %p295 = pneg %p145
        %p296 = pneg %p169
        %p297 = pneg %p166
        %p298 = pneg %p195
        %p299 = pneg %p192
        %s300 = sand.u32 %s182, 1
        %s301 = scalar_lea.sflag [#allocation9], %s300
        %s302 = sand.u32 %s182, 1
        %s303 = smul.addr %s302, 8
        %s304 = scalar_lea.vmem [#allocation10], %s303
        %s305 = sld [smem:[#allocation5 + %s46]]
        %s306 = sadd.s32 %s305, %s47
        %s307 = sld [smem:[#allocation6 + %s46]]
        %p308 = scmp.lt.s32.totalorder %s306, %s307
        %s309 = scalar_select %p308, %s306, %s307
        %s310 = smul.u32 2, %s309
        %s311 = ssub.s32 3, %s310
        %p312 = scmp.lt.s32.totalorder %s311, 2
        %s313 = scalar_select %p312, %s311, 2
        %s314 = smul.u32 64, %s313
        %p315 = scmp.lt.s32.totalorder %s310, 2
        %s316 = scalar_select %p315, %s310, 2
        %s317 = smul.addr %s316, 4
        %s318 = scalar_lea.vmem %s4, %s317
        %s319 = sld [smem:[#allocation5 + %s46]]
        %s320 = sadd.s32 %s319, %s47
        %s321 = sld [smem:[#allocation6 + %s46]]
        %p322 = scmp.lt.s32.totalorder %s320, %s321
        %s323 = scalar_select %p322, %s320, %s321
        %s324 = smul.u32 2, %s323
        %s325 = ssub.s32 3, %s324
        %p326 = scmp.lt.s32.totalorder %s325, 2
        %s327 = scalar_select %p326, %s325, 2
        %s328 = smul.u32 64, %s327
        %p330 = scmp.eq.s32.totalorder %s47, 0
        // Predicated region
        $region45: #{tpu_custom_call.1} parent=39 // pred_check
          %p331 = pneg %p330
        $region46: #{tpu_custom_call.1} parent=39 // pred_check_branch
          %333 = sbr.rel (%p331) target = $region48
        $region47: #{tpu_custom_call.1} parent=39 // pred_region
          %334 = vst [vmem:[%s304] sm:$0xff] 0.0
        $region48: #{tpu_custom_call.1} parent=39 // pred_fallthru
          _
        %s335 = sld [smem:[#allocation3 + %s46]]
        %s336 = sld [smem:[#allocation5 + %s46]]
        %s337 = sld [smem:[#allocation6 + %s46]]
        %p338 = scmp.gt.s32.totalorder %s335, 0
        %s339 = sadd.s32 %s336, %s47
        %p340 = scmp.le.s32.totalorder %s339, %s337
        %p341 = pnand %p338, %p340
        %p342 = pneg %p341
        // Predicated region
        $region49: #{tpu_custom_call.1} parent=39 // pred_check
          _
        $region50: #{tpu_custom_call.1} parent=39 // pred_check_branch
          %344 = sbr.rel (%p341) target = $region52
        $region51: #{tpu_custom_call.1} parent=39 // pred_region
          %v345 = vld [vmem:[%s318] sm:$0xf]
          %v346 = vld [vmem:[%s318 + $0x4] sm:$0xf]
          %v347 = vld [vmem:[%s5] sm:$0xf]
          %v350 = vunpack.c.l.b16 %v345
          %v351 = vunpack.c.l.b16 %v346
          %v352 = vpack.c.b16 %v351, %v350
          %vm353 = vcmask 56320
          %v355 = vsel %vm353, %v352, 0
          %vm357 = vcmask 1042432
          %vm358 = vcmask 1043456
          %v359 = vsel %vm357, 4294967295, 65535
          %v360 = vsel %vm358, %v359, 0
          %v362 = vand.u32 %v347, %v360
          %364 = vmatprep.subr.bf16.mxu0 0
          %365 = vmatpush1.bf16.msra.mxu0 %v362
          %366 = vmatprep.subr.bf16.mxu0 0
          %367 = vmatpush1.bf16.msra.mxu0 0
          %368 = vmatprep.subr.bf16.mxu0 0
          %369 = vmatpush1.bf16.msra.mxu0 0
          %370 = vmatprep.subr.bf16.mxu0 0
          %371 = vmatpush1.bf16.msra.mxu0 0
          %372 = vmatprep.subr.bf16.mxu0 0
          %373 = vmatpush1.bf16.msra.mxu0 0
          %374 = vmatprep.subr.bf16.mxu0 0
          %375 = vmatpush1.bf16.msra.mxu0 0
          %376 = vmatprep.subr.bf16.mxu0 0
          %377 = vmatpush1.bf16.msra.mxu0 0
          %378 = vmatprep.subr.bf16.mxu0 0
          %379 = vmatpush1.bf16.msra.mxu0 0
          %380 = vmatprep.subr.bf16.mxu0 0
          %381 = vmatpush1.bf16.msra.mxu0 0
          %382 = vmatprep.subr.bf16.mxu0 0
          %383 = vmatpush1.bf16.msra.mxu0 0
          %384 = vmatprep.subr.bf16.mxu0 0
          %385 = vmatpush1.bf16.msra.mxu0 0
          %386 = vmatprep.subr.bf16.mxu0 0
          %387 = vmatpush1.bf16.msra.mxu0 0
          %388 = vmatprep.subr.bf16.mxu0 0
          %389 = vmatpush1.bf16.msra.mxu0 0
          %390 = vmatprep.subr.bf16.mxu0 0
          %391 = vmatpush1.bf16.msra.mxu0 0
          %392 = vmatprep.subr.bf16.mxu0 0
          %393 = vmatpush1.bf16.msra.mxu0 0
          %394 = vmatprep.subr.bf16.mxu0 0
          %395 = vmatpush1.bf16.msra.mxu0 0
          %396 = vmatprep.mubr.bf16.mxu0 0
          %397 = vmatmul.mubr.bf16.gmra.mrb[0].mxu0 %v355
          %v398 = vpop.f32.mrb[0].mxu0
          %v399 = vadd.f32 0.0, %v398
          %v400 = vpop.f32.mrb[0].mxu0
          %v401 = vpop.f32.mrb[0].mxu0
          %v402 = vadd.f32 0.0, %v401
          %v403 = vpop.f32.mrb[0].mxu0
          %404 = vdwg.mxu0
          %v405 = vpack.c.bf16 %v402, %v399
          %v406 = vld [vmem:[%s6] sm:$0x1]
          %v408 = vpack.i.b16 %v406, %v406
          %v410 = vlaneseq
          %v411 = vshrl.u32 %v410, 7
          %v412 = vsub.s32 0, %v411
          %v413 = vrot.slane %v408, %v412
          %v414 = vadd.bf16 %v405, %v413
          %v415 = vmax.bf16 %v414, 0
          %v416 = vld [vmem:[#allocation7] sm:$0xf]
          %v417 = vld [vmem:[#allocation7 + $0x4] sm:$0xf]
          %v418 = vld [vmem:[#allocation7 + $0x8] sm:$0xf]
          %v419 = vld [vmem:[#allocation7 + $0xc] sm:$0xf]
          %v420 = vld [vmem:[#allocation7 + $0x10] sm:$0xf]
          %v421 = vld [vmem:[#allocation7 + $0x14] sm:$0xf]
          %v422 = vld [vmem:[#allocation7 + $0x18] sm:$0xf]
          %v423 = vld [vmem:[#allocation7 + $0x1c] sm:$0xf]
          %v424 = vld [vmem:[#allocation7 + $0x20] sm:$0xf]
          %v425 = vld [vmem:[#allocation7 + $0x24] sm:$0xf]
          %v426 = vld [vmem:[#allocation7 + $0x28] sm:$0xf]
          %v427 = vld [vmem:[#allocation7 + $0x2c] sm:$0xf]
          %v428 = vld [vmem:[#allocation7 + $0x30] sm:$0xf]
          %v429 = vld [vmem:[#allocation7 + $0x34] sm:$0xf]
          %v430 = vld [vmem:[#allocation7 + $0x38] sm:$0xf]
          %v431 = vld [vmem:[#allocation7 + $0x3c] sm:$0xf]
          %v432 = vld [vmem:[%s8] sm:$0x1]
          %v434 = vlaneseq
          %v435 = vshrl.u32 %v434, 7
          %v436 = vsub.s32 0, %v435
          %v437 = vrot.slane %v432, %v436
          %v455 = vunpack.c.l.b16 %v416
          %v456 = vunpack.c.l.b16 %v417
          %v457 = vunpack.c.l.b16 %v418
          %v458 = vunpack.c.l.b16 %v419
          %v459 = vunpack.c.l.b16 %v420
          %v460 = vunpack.c.l.b16 %v421
          %v461 = vunpack.c.l.b16 %v422
          %v462 = vunpack.c.l.b16 %v423
          %v463 = vunpack.c.l.b16 %v424
          %v464 = vunpack.c.l.b16 %v425
          %v465 = vunpack.c.l.b16 %v426
          %v466 = vunpack.c.l.b16 %v427
          %v467 = vunpack.c.l.b16 %v428
          %v468 = vunpack.c.l.b16 %v429
          %v469 = vunpack.c.l.b16 %v430
          %v470 = vunpack.c.l.b16 %v431
          %v471 = vpack.c.b16 %v456, %v455
          %v472 = vpack.c.b16 %v458, %v457
          %v473 = vpack.c.b16 %v460, %v459
          %v474 = vpack.c.b16 %v462, %v461
          %v475 = vpack.c.b16 %v464, %v463
          %v476 = vpack.c.b16 %v466, %v465
          %v477 = vpack.c.b16 %v468, %v467
          %v478 = vpack.c.b16 %v470, %v469
          %487 = vmatprep.subr.bf16.mxu0 0
          %488 = vmatpush1.bf16.msra.mxu0 %v471
          %489 = vmatprep.subr.bf16.mxu0 0
          %490 = vmatpush1.bf16.msra.mxu0 %v472
          %491 = vmatprep.subr.bf16.mxu0 0
          %492 = vmatpush1.bf16.msra.mxu0 %v473
          %493 = vmatprep.subr.bf16.mxu0 0
          %494 = vmatpush1.bf16.msra.mxu0 %v474
          %495 = vmatprep.subr.bf16.mxu0 0
          %496 = vmatpush1.bf16.msra.mxu0 %v475
          %497 = vmatprep.subr.bf16.mxu0 0
          %498 = vmatpush1.bf16.msra.mxu0 %v476
          %499 = vmatprep.subr.bf16.mxu0 0
          %500 = vmatpush1.bf16.msra.mxu0 %v477
          %501 = vmatprep.subr.bf16.mxu0 0
          %502 = vmatpush1.bf16.msra.mxu0 %v478
          %503 = vmatprep.subr.bf16.mxu0 0
          %504 = vmatpush1.bf16.msra.mxu0 0
          %505 = vmatprep.subr.bf16.mxu0 0
          %506 = vmatpush1.bf16.msra.mxu0 0
          %507 = vmatprep.subr.bf16.mxu0 0
          %508 = vmatpush1.bf16.msra.mxu0 0
          %509 = vmatprep.subr.bf16.mxu0 0
          %510 = vmatpush1.bf16.msra.mxu0 0
          %511 = vmatprep.subr.bf16.mxu0 0
          %512 = vmatpush1.bf16.msra.mxu0 0
          %513 = vmatprep.subr.bf16.mxu0 0
          %514 = vmatpush1.bf16.msra.mxu0 0
          %515 = vmatprep.subr.bf16.mxu0 0
          %516 = vmatpush1.bf16.msra.mxu0 0
          %517 = vmatprep.subr.bf16.mxu0 0
          %518 = vmatpush1.bf16.msra.mxu0 0
          %519 = vmatprep.mubr.bf16.mxu0 0
          %520 = vmatmul.mubr.bf16.gmra.mrb[0].mxu0 %v415
          %v521 = vpop.f32.mrb[0].mxu0
          %v522 = vadd.f32 %v437, %v521
          %v523 = vpop.f32.mrb[0].mxu0
          %v524 = vpop.f32.mrb[0].mxu0
          %v525 = vadd.f32 %v437, %v524
          %v526 = vpop.f32.mrb[0].mxu0
          %527 = vdwg.mxu0
          %v528 = vmax.f32 %v522, 0.0
          %v529 = vmax.f32 %v525, 0.0
          %s530 = sld [smem:[#allocation4 + %s46]]
          %p531 = scmp.lt.s32.totalorder %s339, %s337
          %s532 = scalar_select %p531, %s339, %s337
          %s533 = smul.u32 %s532, 16
          %s534 = ssub.s32 %s530, %s533
          %s535 = sadd.s32 %s530, %s335
          %s536 = ssub.s32 %s535, %s533
          %p537 = scmp.gt.s32.totalorder %s534, 0
          %p538 = scmp.lt.s32.totalorder %s536, 16
          %p539 = por %p537, %p538
          // Predicated region
          $region53: #{tpu_custom_call.1} parent=51 // pred_check
            %p540 = pneg %p539
          $region54: #{tpu_custom_call.1} parent=51 // pred_check_branch
            %542 = sbr.rel (%p540) target = $region56
          $region55: #{tpu_custom_call.1} parent=51 // pred_region
            %v543 = vlaneseq
            %v544 = vshrl.u32 %v543, 7
            %v545 = vadd.s32 %v544, 8
            %v546 = vstv %s534
            %vm547 = vcmp.ge.s32.totalorder %v544, %v546
            %vm548 = vcmp.ge.s32.totalorder %v545, %v546
            %v549 = vstv %s536
            %vm550 = vcmp.lt.s32.totalorder %v544, %v549
            %vm551 = vcmp.lt.s32.totalorder %v545, %v549
            %vm552 = vmand %vm547, %vm550
            %vm553 = vmand %vm548, %vm551
            %v554 = vsel %vm552, 1, 0
            %v555 = vsel %vm553, 1, 0
            %vm556 = vcmp.eq.s32.totalorder %v554, 1
            %vm557 = vcmp.eq.s32.totalorder %v555, 1
            %v558 = vsel %vm556, %v528, 0.0
            %v559 = vsel %vm557, %v529, 0.0
            %v560 = vmax.f32 %v558, %v559
            %v561 = vld [vmem:[%s304] sm:$0xff]
            %v562 = vmax.f32 %v561, %v560
            %563 = vst [vmem:[%s304] sm:$0xff] %v562
          $region56: #{tpu_custom_call.1} parent=51 // pred_fallthru
            _
          %p564 = pneg %p539
          // Predicated region
          $region57: #{tpu_custom_call.1} parent=51 // pred_check
            _
          $region58: #{tpu_custom_call.1} parent=51 // pred_check_branch
            %566 = sbr.rel (%p539) target = $region60
          $region59: #{tpu_custom_call.1} parent=51 // pred_region
            %v567 = vmax.f32 %v528, %v529
            %v568 = vld [vmem:[%s304] sm:$0xff]
            %v569 = vmax.f32 %v568, %v567
            %570 = vst [vmem:[%s304] sm:$0xff] %v569
          $region60: #{tpu_custom_call.1} parent=51 // pred_fallthru
            _
        $region52: #{tpu_custom_call.1} parent=39 // pred_fallthru
          _
        %s571 = sand.u32 %s182, 1
        %s572 = scalar_lea.sflag [#allocation9], %s571
        %s573 = sand.u32 %s182, 1
        %s574 = smul.addr %s573, 8
        %s575 = scalar_lea.vmem [#allocation10], %s574
        // Predicated region
        $region61: #{tpu_custom_call.1} parent=39 // pred_check
          %p576 = pneg %p192
        $region62: #{tpu_custom_call.1} parent=39 // pred_check_branch
          %578 = sbr.rel (%p576) target = $region64
        $region63: #{tpu_custom_call.1} parent=39 // pred_region
          %s580 = ssub.s32 128, 128
          %581 = vsyncadd %s572, %s580
          %s582 = smul.addr %s46, 128
          %s583 = scalar_lea.hbm %s9, %s582
          %s585 = sshll.u32 %s575, 4
          %s586 = int_to_ptr.vmem [resolvable:$true] %s585
          %588 = dma.vmem_to_hbm [thread:$0]  %s586, 128, %s583, %s572
        $region64: #{tpu_custom_call.1} parent=39 // pred_fallthru
          _
      $region40: #{tpu_custom_call.1} parent=5 // pred_fallthru
        _
      %p589 = scmp.le.s32.totalorder 2, %s37
      // Predicated region
      $region65: #{tpu_custom_call.1} parent=5 // pred_check
        %p590 = pneg %p589
      $region66: #{tpu_custom_call.1} parent=5 // pred_check_branch
        %592 = sbr.rel (%p590) target = $region68
      $region67: #{tpu_custom_call.1} parent=5 // pred_region
        %s593 = ssub.s32 %s37, 2
        // Predicated region
        $region69: #{tpu_custom_call.1} parent=67 // pred_check
          %p594 = pneg %p198
        $region70: #{tpu_custom_call.1} parent=67 // pred_check_branch
          %596 = sbr.rel (%p594) target = $region72
        $region71: #{tpu_custom_call.1} parent=67 // pred_region
          %s597 = sand.u32 %s183, 1
          %s598 = scalar_lea.sflag [#allocation9], %s597
          %s599 = sand.u32 %s183, 1
          %s600 = smul.addr %s599, 8
          %s601 = scalar_lea.vmem [#allocation10], %s600
          %602 = dma.done %s598, 128
        $region72: #{tpu_custom_call.1} parent=67 // pred_fallthru
          _
      $region68: #{tpu_custom_call.1} parent=5 // pred_fallthru
        _
    $region6: #{tpu_custom_call.1} parent=1 // loop_footer
      %s41 = sadd.s32 1, %s37
    $region7: #{tpu_custom_call.1} parent=1 // loop_footer_branch
      %36 = sbr.rel target = $region3
    $region8: #{tpu_custom_call.1} parent=1 // loop_exit
      _
    %603 = vsyncpa [#allocation8], 1
    %s604 = scalar_lea.sflag [#allocation8], 1
    %605 = vsyncpa %s604, 1
    %606 = vsyncpa [#allocation9], 1
    %s607 = scalar_lea.sflag [#allocation9], 1
    %608 = vsyncpa %s607, 1

</llo_original>
